<compile_context>
chip_gen: v7x
topology: tpu7x:2x2x1
jax: 0.10.0
libtpu: 0.0.40
codegen_flags: <defaults>
</compile_context>

<pallas_src>
import functools

import jax
import jax.numpy as jnp
from jax.experimental import pallas as pl
from jax.experimental.pallas import tpu as pltpu


def _conv_bias_relu_kernel(x_ref, w_ref, b_ref, o_ref, *, KH, TH, apply_relu):
    """One (batch, row-tile) grid step.

    x_ref: (1, 1, THp, Wp*Cin)    bf16 input row strip (halo rows, pre-cast)
    w_ref: (KH, Wp*Cin, WO_pad)   bf16 banded weights (resident, constant index)
    b_ref: (1, WO_pad)            f32 bias, tiled over W_out and lane-padded
    o_ref: (1, 1, TH, WO_pad)     f32 output (lane-dense last dim)
    """
    WOp = o_ref.shape[-1]
    # Accumulator starts as the broadcast bias (saves a separate full-output add).
    acc = jnp.broadcast_to(b_ref[...], (TH, WOp))
    # KH deep matmuls: (TH, Wp*Cin) @ (Wp*Cin, WO_pad), bf16 MXU inputs, f32 acc.
    # The strip is already bf16 (cast once in the wrapper); kh only shifts the
    # sublane (row) axis of the strip once per dot.
    for kh in range(KH):  # unrolled; KH is small and static
        acc = acc + jnp.dot(x_ref[0, 0, kh:kh + TH, :], w_ref[kh],
                            preferred_element_type=jnp.float32)
    if apply_relu:
        acc = jnp.maximum(acc, 0.0)
    o_ref[0, 0] = acc.astype(o_ref.dtype)


def _round_up(x, m):
    return -(-x // m) * m


def _choose_row_tile(h_out, kh, target=256):
    """Take all output rows if they fit the target; otherwise the largest
    TH <= target such that THp = TH + KH - 1 is a multiple of 8 (8-aligned strips)."""
    if h_out <= target:
        return h_out
    th = target - ((target + kh - 1) % 8)
    return max(th, 8)


def conv_module_forward(x_nchw, weight, bias, *, stride=1, padding=1, dilation=1,
                        groups=1, activation="relu", row_tile_target=256):
    """Pallas implementation of ConvModule.forward (conv -> [norm: None] -> relu).

    x_nchw : (N, Cin, H, W)      float32
    weight : (Cout, Cin, KH, KW) (PyTorch Conv2d OIHW layout)
    bias   : (Cout,) or None
    returns: (N, Cout, H_out, W_out) float32
    """
    if stride != 1 or dilation != 1 or groups != 1:
        raise NotImplementedError(
            "conv_module_forward supports stride=1, dilation=1, groups=1 only")
    assert activation in (None, "relu"), "ConvModule only supports 'relu' / None"

    N, Cin, H, W = x_nchw.shape
    Cout, Cin_w, KH, KW = weight.shape
    assert Cin == Cin_w
    H_out = H + 2 * padding - KH + 1
    W_out = W + 2 * padding - KW + 1
    Wp = W + 2 * padding
    WC = Wp * Cin                      # MXU contraction width
    WO = W_out * Cout                  # logical output width
    WO_pad = _round_up(WO, 128)        # lane-dense (unmasked vst) output width

    # Row (H) tiling with a (KH-1)-row halo.
    TH = _choose_row_tile(H_out, KH, row_tile_target)
    nT = pl.cdiv(H_out, TH)
    H_out_pad = nT * TH
    THp = TH + KH - 1
    Hp_need = H_out_pad + KH - 1

    # ---- activation layout plumbing: NCHW -> NHWC -> pad -> (H, W*Cin), bf16 once ----
    x_nhwc = jnp.transpose(x_nchw, (0, 2, 3, 1))
    extra_rows = Hp_need - (H + 2 * padding)        # >= 0 (row-tile remainder)
    x_pad = jnp.pad(x_nhwc, ((0, 0),
                             (padding, padding + extra_rows),
                             (padding, padding),
                             (0, 0)))
    x_flat = x_pad.reshape(N, Hp_need, WC).astype(jnp.bfloat16)
    # Overlapping row strips (halo = KH-1 rows): (N, nT, THp, WC).  With the large TH
    # the duplication ratio THp/TH is ~1, and there is no duplication at all when
    # nT == 1 (the common small-H case, including this test).
    # TODO(synk): for very large H, keep x_flat in HBM (memory_space=pl.ANY) and
    #             manually DMA pl.ds(t*TH, THp) row windows instead of stacking.
    if nT == 1:
        strips = x_flat[:, None]
    else:
        strips = jnp.stack(
            [x_flat[:, t * TH: t * TH + THp, :] for t in range(nT)], axis=1)

    # ---- banded (Toeplitz) weights: B[kh, p*Cin+c, w*Cout+k] = W[kh, p-w, c, k] ----
    w_hwio = jnp.transpose(weight, (2, 3, 1, 0)).astype(jnp.float32)  # (KH,KW,Cin,Cout)
    p_idx = jnp.arange(Wp)[None, :, None]
    w_idx = jnp.arange(W_out)[None, None, :]
    kw_idx = jnp.arange(KW)[:, None, None]
    sel = (p_idx == w_idx + kw_idx).astype(jnp.float32)               # (KW, Wp, W_out)
    banded = jnp.einsum("xpw,hxck->hpcwk", sel, w_hwio)               # (KH,Wp,Cin,W_out,Cout)
    banded = banded.reshape(KH, WC, WO)
    banded = jnp.pad(banded, ((0, 0), (0, 0), (0, WO_pad - WO)))      # lane pad
    banded = banded.astype(jnp.bfloat16)                              # bf16 MXU weights

    # Bias laid out over the (w, cout) lane dim, lane-padded.
    if bias is None:
        bias = jnp.zeros((Cout,), jnp.float32)
    bias_lanes = jnp.tile(bias.astype(jnp.float32), W_out)
    bias_lanes = jnp.pad(bias_lanes, (0, WO_pad - WO)).reshape(1, WO_pad)

    # ---- explicit VMEM budget (headroom-safe on v7x's 64 MiB physical VMEM) ----
    w_bytes = KH * WC * WO_pad * 2
    if w_bytes > (24 << 20):
        # TODO(synk): tile the weight over a Cout/W_out grid axis instead of keeping
        #             the full banded weight resident.
        raise NotImplementedError("resident banded weight exceeds the VMEM budget")
    est = 2 * (THp * WC * 2 + TH * WO_pad * 4 + w_bytes) + WO_pad * 4
    vmem_limit = int(min(max(4 * est, 32 << 20), 48 << 20))

    kernel = functools.partial(
        _conv_bias_relu_kernel, KH=KH, TH=TH,
        apply_relu=(activation == "relu"))

    out_tiles = pl.pallas_call(
        kernel,
        out_shape=jax.ShapeDtypeStruct((N, nT, TH, WO_pad), jnp.float32),
        grid_spec=pltpu.PrefetchScalarGridSpec(
            num_scalar_prefetch=0,
            grid=(N, nT),
            in_specs=[
                pl.BlockSpec((1, 1, THp, WC), lambda n, t: (n, t, 0, 0)),
                pl.BlockSpec((KH, WC, WO_pad), lambda n, t: (0, 0, 0)),
                pl.BlockSpec((1, WO_pad), lambda n, t: (0, 0)),
            ],
            out_specs=pl.BlockSpec((1, 1, TH, WO_pad), lambda n, t: (n, t, 0, 0)),
        ),
        compiler_params=pltpu.CompilerParams(
            dimension_semantics=("parallel", "parallel"),
            vmem_limit_bytes=vmem_limit),
    )(strips, banded, bias_lanes)

    # Drop row-tile / lane padding, unfold (W_out, Cout), back to NCHW.
    # TODO(synk): consumers that accept NHWC can skip this final transpose
    #             (saves one output-sized HBM round trip).
    out = out_tiles.reshape(N, H_out_pad, WO_pad)[:, :H_out, :WO]
    out = out.reshape(N, H_out, W_out, Cout)
    return jnp.transpose(out, (0, 3, 1, 2))


def _init_params(key, in_channels, out_channels, kernel_size):
    """Deterministic kaiming_normal (mode=fan_out, relu) init — matches mmdet's
    kaiming_init(self.conv, nonlinearity='relu')."""
    kh = kw = kernel_size
    fan_out = out_channels * kh * kw
    std = (2.0 / fan_out) ** 0.5
    w = std * jax.random.normal(key, (out_channels, in_channels, kh, kw), jnp.float32)
    b = jnp.zeros((out_channels,), jnp.float32)
    return w, b


if __name__ == "__main__":
    key = jax.random.PRNGKey(0)
    k_x, k_w, k_b = jax.random.split(key, 3)

    N, Cin, H, W = 2, 4, 16, 16
    Cout, K, pad = 8, 3, 1

    x = jax.random.normal(k_x, (N, Cin, H, W), jnp.float32)
    weight, _ = _init_params(k_w, Cin, Cout, K)
    # ConvModule's kaiming_init zeroes the bias; use a non-zero bias here purely to
    # exercise the bias path in the self-test.
    bias = 0.1 * jax.random.normal(k_b, (Cout,), jnp.float32)

    out = conv_module_forward(x, weight, bias, padding=pad, activation="relu")
    out = jax.block_until_ready(out)

    # Reference: XLA conv on the same bf16 inputs with f32 accumulation
    # (the kernel feeds the MXU bf16 operands, so compare like-for-like).
    ref = jax.lax.conv_general_dilated(
        x.astype(jnp.bfloat16), weight.astype(jnp.bfloat16),
        window_strides=(1, 1), padding=((pad, pad), (pad, pad)),
        dimension_numbers=("NCHW", "OIHW", "NCHW"),
        preferred_element_type=jnp.float32)
    ref = jnp.maximum(ref + bias[None, :, None, None], 0.0)

    assert out.shape == (N, Cout, H, W)
    assert jnp.allclose(out, ref, atol=2e-2, rtol=2e-2)

    print("KERNEL_OK")
</pallas_src>

<mosaic_0001>
module attributes {stable_mosaic.version = 11 : i64} {
  func.func @_conv_bias_relu_kernel(%arg0: i32, %arg1: i32, %arg2: memref<1x1x18x72xbf16, #tpu.memory_space<vmem>>, %arg3: memref<3x72x128xbf16, #tpu.memory_space<vmem>>, %arg4: memref<1x128xf32, #tpu.memory_space<vmem>>, %arg5: memref<1x1x16x128xf32, #tpu.memory_space<vmem>>) attributes {dimension_semantics = [#tpu.dimension_semantics<parallel>, #tpu.dimension_semantics<parallel>], iteration_bounds = array<i64: 2, 1>, scalar_prefetch = 0 : i64, scratch_operands = 0 : i64, tpu.core_type = #tpu.core_type<tc>, window_params = [{transform_indices = @transform_0, window_bounds = array<i64: 1, 1, 18, 72>}, {pipeline_mode = #tpu.pipeline_mode<synchronous>, transform_indices = @transform_1, window_bounds = array<i64: 3, 72, 128>}, {pipeline_mode = #tpu.pipeline_mode<synchronous>, transform_indices = @transform_2, window_bounds = array<i64: 1, 128>}, {transform_indices = @transform_3, window_bounds = array<i64: 1, 1, 16, 128>}]} {
    %c0 = arith.constant 0 : index
    %c0_0 = arith.constant 0 : index
    %0 = vector.load %arg4[%c0, %c0_0] : memref<1x128xf32, #tpu.memory_space<vmem>>, vector<1x128xf32>
    %1 = vector.shape_cast %0 : vector<1x128xf32> to vector<1x128xf32>
    %2 = vector.broadcast %1 : vector<1x128xf32> to vector<16x128xf32>
    %c0_1 = arith.constant 0 : index
    %c0_2 = arith.constant 0 : index
    %c0_3 = arith.constant 0 : index
    %c0_4 = arith.constant 0 : index
    %3 = vector.load %arg2[%c0_1, %c0_2, %c0_3, %c0_4] : memref<1x1x18x72xbf16, #tpu.memory_space<vmem>>, vector<1x1x16x72xbf16>
    %4 = vector.shape_cast %3 : vector<1x1x16x72xbf16> to vector<16x72xbf16>
    %c0_5 = arith.constant 0 : index
    %c0_6 = arith.constant 0 : index
    %c0_7 = arith.constant 0 : index
    %5 = vector.load %arg3[%c0_5, %c0_6, %c0_7] : memref<3x72x128xbf16, #tpu.memory_space<vmem>>, vector<1x72x128xbf16>
    %6 = vector.shape_cast %5 : vector<1x72x128xbf16> to vector<72x128xbf16>
    %cst = arith.constant dense<0.000000e+00> : vector<16x128xf32>
    %7 = tpu.matmul %4, %6, %cst {dimension_numbers = #tpu.dot_dimension_numbers<[1], [0], [0], [1], [0, 0, 1, 1], [], []>} : vector<16x72xbf16>, vector<72x128xbf16>, vector<16x128xf32> -> vector<16x128xf32>
    %8 = arith.addf %2, %7 : vector<16x128xf32>
    %c0_8 = arith.constant 0 : index
    %c0_9 = arith.constant 0 : index
    %c1 = arith.constant 1 : index
    %c0_10 = arith.constant 0 : index
    %9 = vector.load %arg2[%c0_8, %c0_9, %c1, %c0_10] : memref<1x1x18x72xbf16, #tpu.memory_space<vmem>>, vector<1x1x16x72xbf16>
    %10 = vector.shape_cast %9 : vector<1x1x16x72xbf16> to vector<16x72xbf16>
    %c1_11 = arith.constant 1 : index
    %c0_12 = arith.constant 0 : index
    %c0_13 = arith.constant 0 : index
    %11 = vector.load %arg3[%c1_11, %c0_12, %c0_13] : memref<3x72x128xbf16, #tpu.memory_space<vmem>>, vector<1x72x128xbf16>
    %12 = vector.shape_cast %11 : vector<1x72x128xbf16> to vector<72x128xbf16>
    %cst_14 = arith.constant dense<0.000000e+00> : vector<16x128xf32>
    %13 = tpu.matmul %10, %12, %cst_14 {dimension_numbers = #tpu.dot_dimension_numbers<[1], [0], [0], [1], [0, 0, 1, 1], [], []>} : vector<16x72xbf16>, vector<72x128xbf16>, vector<16x128xf32> -> vector<16x128xf32>
    %14 = arith.addf %8, %13 : vector<16x128xf32>
    %c0_15 = arith.constant 0 : index
    %c0_16 = arith.constant 0 : index
    %c2 = arith.constant 2 : index
    %c0_17 = arith.constant 0 : index
    %15 = vector.load %arg2[%c0_15, %c0_16, %c2, %c0_17] : memref<1x1x18x72xbf16, #tpu.memory_space<vmem>>, vector<1x1x16x72xbf16>
    %16 = vector.shape_cast %15 : vector<1x1x16x72xbf16> to vector<16x72xbf16>
    %c2_18 = arith.constant 2 : index
    %c0_19 = arith.constant 0 : index
    %c0_20 = arith.constant 0 : index
    %17 = vector.load %arg3[%c2_18, %c0_19, %c0_20] : memref<3x72x128xbf16, #tpu.memory_space<vmem>>, vector<1x72x128xbf16>
    %18 = vector.shape_cast %17 : vector<1x72x128xbf16> to vector<72x128xbf16>
    %cst_21 = arith.constant dense<0.000000e+00> : vector<16x128xf32>
    %19 = tpu.matmul %16, %18, %cst_21 {dimension_numbers = #tpu.dot_dimension_numbers<[1], [0], [0], [1], [0, 0, 1, 1], [], []>} : vector<16x72xbf16>, vector<72x128xbf16>, vector<16x128xf32> -> vector<16x128xf32>
    %20 = arith.addf %14, %19 : vector<16x128xf32>
    %cst_22 = arith.constant 0.000000e+00 : f32
    %21 = vector.broadcast %cst_22 : f32 to vector<16x128xf32>
    %22 = arith.maximumf %20, %21 : vector<16x128xf32>
    %c0_23 = arith.constant 0 : index
    %c0_24 = arith.constant 0 : index
    %c0_25 = arith.constant 0 : index
    %c0_26 = arith.constant 0 : index
    %23 = vector.load %arg5[%c0_23, %c0_24, %c0_25, %c0_26] : memref<1x1x16x128xf32, #tpu.memory_space<vmem>>, vector<1x1x16x128xf32>
    %24 = vector.shape_cast %23 : vector<1x1x16x128xf32> to vector<16x128xf32>
    %25 = vector.shape_cast %22 : vector<16x128xf32> to vector<1x1x16x128xf32>
    tpu.vector_store %arg5[%c0_23, %c0_24, %c0_25, %c0_26], %25 {strides = array<i32>} : memref<1x1x16x128xf32, #tpu.memory_space<vmem>>, vector<1x1x16x128xf32>,
    return
  }
  func.func @transform_0(%arg0: i32, %arg1: i32) -> (i32, i32, i32, i32) {
    %c0_i32 = arith.constant 0 : i32
    %c0_i32_0 = arith.constant 0 : i32
    %c0_i32_1 = arith.constant 0 : i32
    return %arg0, %arg1, %c0_i32, %c0_i32_0 : i32, i32, i32, i32
  }
  func.func @transform_1(%arg0: i32, %arg1: i32) -> (i32, i32, i32) {
    %c0_i32 = arith.constant 0 : i32
    %c0_i32_0 = arith.constant 0 : i32
    %c0_i32_1 = arith.constant 0 : i32
    %c0_i32_2 = arith.constant 0 : i32
    return %c0_i32, %c0_i32_0, %c0_i32_1 : i32, i32, i32
  }
  func.func @transform_2(%arg0: i32, %arg1: i32) -> (i32, i32) {
    %c0_i32 = arith.constant 0 : i32
    %c0_i32_0 = arith.constant 0 : i32
    %c0_i32_1 = arith.constant 0 : i32
    return %c0_i32, %c0_i32_0 : i32, i32
  }
  func.func @transform_3(%arg0: i32, %arg1: i32) -> (i32, i32, i32, i32) {
    %c0_i32 = arith.constant 0 : i32
    %c0_i32_0 = arith.constant 0 : i32
    %c0_i32_1 = arith.constant 0 : i32
    return %arg0, %arg1, %c0_i32, %c0_i32_0 : i32, i32, i32, i32
  }
}

</mosaic_0001>

<llo_original>
// kernel: tpu_custom_call.1
$region0: #{tpu_custom_call.1}
  #allocation0 [shape = 'u32[]', space=smem, size = 0x4, offset = 0x4, fixed_abs, tag = 'smem constant byte address 0x4 - core index']
  #allocation1 [shape = 'u32[144,128]{1,0:T(1,128)}', space=vmem, size = 0x12000, scoped, tag = 'internal scratch']
  %s0 = inlined_call_operand.vmem [shape: bf16[2,1,18,72], index: 0, kind: input, shape index: {}]
  %s1 = inlined_call_operand.hbm [shape: bf16[3,72,128], index: 1, kind: input, shape index: {}]
  %s2 = inlined_call_operand.vmem [shape: f32[1,128], index: 2, kind: input, shape index: {}]
  %s3 = inlined_call_operand.hbm [shape: f32[2,1,16,128], index: 3, kind: output, shape index: {}]
  %s4 = sld [smem:[#allocation0]]
  $region49: #{tpu_custom_call.1} parent=0
    _
  %s6 = ssub.s32 1, %s4
  %s7 = scalar_select 0, %s6, %s4
  $region1: #{tpu_custom_call.1} parent=0
    #allocation2 [shape = 'u8[55296]{0}', space=vmem, size = 0xd800, scoped, tag = 'input window, operand 1, single buffered']
    #allocation3 [shape = 's32[2]{0}', space=sflag, size = 0x8, scoped, tag = 'scoped memory for tpu_custom_call.1']
    #allocation4 [shape = 's32[2]{0}', space=sflag, size = 0x8, scoped, tag = 'scoped memory for tpu_custom_call.1']
    #allocation5 [shape = 'u8[16384]{0}', space=vmem, size = 0x4000, scoped, tag = 'output window, operand 0']
    %8 = vsyncpa [#allocation3], 0
    %9 = vsyncpa [#allocation4], 0
    %s10 = scalar_lea.sflag [#allocation4], 1
    %11 = vsyncpa %s10, 0
    loop: start=0, step=1, limit=4
    $region2: #{tpu_custom_call.1} parent=1 // loop_pre_header
      _
    $region3: #{tpu_custom_call.1} parent=1 // loop_header
      %s13 = sphi 0, %s17
      %p14 = scmp.ge.s32.totalorder %s13, 4
      %s20 = sphi 0, %s32
      %s21 = sphi 0, %s28
      %s22 = sphi 0, %s20
      %s23 = sphi 0, %s21
      %s24 = sphi 0, %s22
      %s25 = sphi 0, %s23
      %s37 = sphi 0, %s39
      %s40 = sphi 0, %s37
      %s41 = sphi 0, %s40
      %s57 = sphi 0, %s41
      %s61 = sphi 0, %s61
      %s63 = sphi 0, %s61
      %s64 = sphi 0, %s63
      %s78 = sphi 0, %s64
      %s82 = sphi 0, %s82
      %s84 = sphi 0, %s82
      %s85 = sphi 0, %s84
      %s99 = sphi 0, %s85
      %s107 = sphi 0, %s109
      %s110 = sphi 0, %s107
      %s111 = sphi 0, %s110
      %s127 = sphi 0, %s111
    $region4: #{tpu_custom_call.1} parent=1 // loop_header_branch
      %16 = sbr.rel (%p14) target = $region8
    $region5: #{tpu_custom_call.1} parent=1 // loop_body
      %s18 = ssub.s32 %s13, 1
      %s19 = ssub.s32 %s13, 2
      %s26 = sadd.s32 1, %s21
      %p27 = scmp.ge.s32.totalorder %s26, 1
      %s28 = scalar_select %p27, 0, %s26
      %s29 = sadd.s32 1, %s20
      %s30 = scalar_select %p27, %s29, %s20
      %p31 = scmp.ge.s32.totalorder %s30, 2
      %s32 = scalar_select %p31, 0, %s30
      %s33 = ssub.s32 %s20, %s32
      %s34 = ssub.s32 %s21, %s28
      %s35 = sor.u32 %s33, %s34
      %p36 = scmp.eq.s32.totalorder %s35, 0
      %s38 = sadd.s32 %s37, 1
      %s39 = scalar_select %p36, %s37, %s38
      %p42 = pneg %p36
      %p43 = scmp.eq.s32.totalorder %s13, 1
      %p44 = por %p42, %p43
      %p45 = scmp.ne.s32.totalorder %s37, %s40
      %p46 = scmp.eq.s32.totalorder %s13, 0
      %p47 = por %p45, %p46
      %p48 = scmp.ne.s32.totalorder %s37, %s40
      %p49 = scmp.eq.s32.totalorder %s18, 1
      %p50 = por %p48, %p49
      %p51 = scmp.ne.s32.totalorder %s40, %s41
      %p52 = scmp.eq.s32.totalorder %s18, 0
      %p53 = por %p51, %p52
      %p54 = scmp.ne.s32.totalorder %s40, %s41
      %p55 = scmp.eq.s32.totalorder %s19, 1
      %p56 = por %p54, %p55
      %p58 = scmp.ne.s32.totalorder %s41, %s57
      %p59 = scmp.eq.s32.totalorder %s19, 0
      %p60 = por %p58, %p59
      %s62 = sadd.s32 %s61, 1
      %p65 = scmp.eq.s32.totalorder %s13, 1
      %p66 = scmp.ne.s32.totalorder %s61, %s63
      %p67 = scmp.eq.s32.totalorder %s13, 0
      %p68 = por %p66, %p67
      %p69 = scmp.ne.s32.totalorder %s61, %s63
      %p70 = scmp.eq.s32.totalorder %s18, 1
      %p71 = por %p69, %p70
      %p72 = scmp.ne.s32.totalorder %s63, %s64
      %p73 = scmp.eq.s32.totalorder %s18, 0
      %p74 = por %p72, %p73
      %p75 = scmp.ne.s32.totalorder %s63, %s64
      %p76 = scmp.eq.s32.totalorder %s19, 1
      %p77 = por %p75, %p76
      %p79 = scmp.ne.s32.totalorder %s64, %s78
      %p80 = scmp.eq.s32.totalorder %s19, 0
      %p81 = por %p79, %p80
      %s83 = sadd.s32 %s82, 1
      %p86 = scmp.eq.s32.totalorder %s13, 1
      %p87 = scmp.ne.s32.totalorder %s82, %s84
      %p88 = scmp.eq.s32.totalorder %s13, 0
      %p89 = por %p87, %p88
      %p90 = scmp.ne.s32.totalorder %s82, %s84
      %p91 = scmp.eq.s32.totalorder %s18, 1
      %p92 = por %p90, %p91
      %p93 = scmp.ne.s32.totalorder %s84, %s85
      %p94 = scmp.eq.s32.totalorder %s18, 0
      %p95 = por %p93, %p94
      %p96 = scmp.ne.s32.totalorder %s84, %s85
      %p97 = scmp.eq.s32.totalorder %s19, 1
      %p98 = por %p96, %p97
      %p100 = scmp.ne.s32.totalorder %s85, %s99
      %p101 = scmp.eq.s32.totalorder %s19, 0
      %p102 = por %p100, %p101
      %s103 = ssub.s32 %s20, %s32
      %s104 = ssub.s32 %s21, %s28
      %s105 = sor.u32 %s103, %s104
      %p106 = scmp.eq.s32.totalorder %s105, 0
      %s108 = sadd.s32 %s107, 1
      %s109 = scalar_select %p106, %s107, %s108
      %p112 = pneg %p106
      %p113 = scmp.eq.s32.totalorder %s13, 1
      %p114 = por %p112, %p113
      %p115 = scmp.ne.s32.totalorder %s107, %s110
      %p116 = scmp.eq.s32.totalorder %s13, 0
      %p117 = por %p115, %p116
      %p118 = scmp.ne.s32.totalorder %s107, %s110
      %p119 = scmp.eq.s32.totalorder %s18, 1
      %p120 = por %p118, %p119
      %p121 = scmp.ne.s32.totalorder %s110, %s111
      %p122 = scmp.eq.s32.totalorder %s18, 0
      %p123 = por %p121, %p122
      %p124 = scmp.ne.s32.totalorder %s110, %s111
      %p125 = scmp.eq.s32.totalorder %s19, 1
      %p126 = por %p124, %p125
      %p128 = scmp.ne.s32.totalorder %s111, %s127
      %p129 = scmp.eq.s32.totalorder %s19, 0
      %p130 = por %p128, %p129
      %p131 = scmp.le.s32.totalorder 1, %s13
      %p132 = scmp.lt.s32.totalorder %s13, 3
      %p133 = pnand %p131, %p132
      %p134 = pneg %p133
      // Predicated region
      $region9: #{tpu_custom_call.1} parent=5 // pred_check
        _
      $region10: #{tpu_custom_call.1} parent=5 // pred_check_branch
        %136 = sbr.rel (%p133) target = $region12
      $region11: #{tpu_custom_call.1} parent=5 // pred_region
        %s137 = ssub.s32 %s13, 1
        // Predicated region
        $region13: #{tpu_custom_call.1} parent=11 // pred_check
          %p138 = pneg %p74
        $region14: #{tpu_custom_call.1} parent=11 // pred_check_branch
          %140 = sbr.rel (%p138) target = $region16
        $region15: #{tpu_custom_call.1} parent=11 // pred_region
          %s142 = ssub.s32 1728, 1728
          %143 = vsyncadd [#allocation3], %s142
          %s144 = sshll.u32 [#allocation2], 4
          %s145 = int_to_ptr.vmem [resolvable:$true] %s144
          %150 = dma.hbm_to_vmem [thread:$0]  %s1, 1728, %s145, [#allocation3], 64, 64, 4
        $region16: #{tpu_custom_call.1} parent=11 // pred_fallthru
          _
        // Predicated region
        $region17: #{tpu_custom_call.1} parent=11 // pred_check
          %p151 = pneg %p95
        $region18: #{tpu_custom_call.1} parent=11 // pred_check_branch
          %153 = sbr.rel (%p151) target = $region20
        $region19: #{tpu_custom_call.1} parent=11 // pred_region
          _
        $region20: #{tpu_custom_call.1} parent=11 // pred_fallthru
          _
      $region12: #{tpu_custom_call.1} parent=5 // pred_fallthru
        _
      %p154 = scmp.lt.s32.totalorder %s13, 2
      // Predicated region
      $region21: #{tpu_custom_call.1} parent=5 // pred_check
        %p155 = pneg %p154
      $region22: #{tpu_custom_call.1} parent=5 // pred_check_branch
        %157 = sbr.rel (%p155) target = $region24
      $region23: #{tpu_custom_call.1} parent=5 // pred_region
        // Predicated region
        $region25: #{tpu_custom_call.1} parent=23 // pred_check
          %p158 = pneg %p47
        $region26: #{tpu_custom_call.1} parent=23 // pred_check_branch
          %160 = sbr.rel (%p158) target = $region28
        $region27: #{tpu_custom_call.1} parent=23 // pred_region
          %p161 = scmp.lt.s32.totalorder %s20, 1
          %s162 = scalar_select %p161, %s20, 1
          %p163 = scmp.lt.s32.totalorder %s21, 0
          %s164 = scalar_select %p163, %s21, 0
          %s165 = smul.addr %s164, 3
          %s166 = smul.addr %s162, 3
          %s167 = sadd.s32 %s165, %s166
          %s168 = smul.addr %s167, 4
          %s169 = scalar_lea.vmem %s0, %s168
        $region28: #{tpu_custom_call.1} parent=23 // pred_fallthru
          _
      $region24: #{tpu_custom_call.1} parent=5 // pred_fallthru
        _
      %p170 = scmp.le.s32.totalorder 1, %s13
      %p171 = scmp.lt.s32.totalorder %s13, 3
      %p172 = pnand %p170, %p171
      %p173 = pneg %p172
      // Predicated region
      $region29: #{tpu_custom_call.1} parent=5 // pred_check
        _
      $region30: #{tpu_custom_call.1} parent=5 // pred_check_branch
        %175 = sbr.rel (%p172) target = $region32
      $region31: #{tpu_custom_call.1} parent=5 // pred_region
        %s176 = ssub.s32 %s13, 1
        // Predicated region
        $region33: #{tpu_custom_call.1} parent=31 // pred_check
          %p177 = pneg %p74
        $region34: #{tpu_custom_call.1} parent=31 // pred_check_branch
          %179 = sbr.rel (%p177) target = $region36
        $region35: #{tpu_custom_call.1} parent=31 // pred_region
          %180 = dma.done [#allocation3], 1728
        $region36: #{tpu_custom_call.1} parent=31 // pred_fallthru
          _
        %p181 = scmp.lt.s32.totalorder %s22, 1
        %s182 = scalar_select %p181, %s22, 1
        %p183 = scmp.lt.s32.totalorder %s23, 0
        %s184 = scalar_select %p183, %s23, 0
        %s185 = smul.addr %s184, 3
        %s186 = smul.addr %s182, 3
        %s187 = sadd.s32 %s185, %s186
        %s188 = smul.addr %s187, 4
        %s189 = scalar_lea.vmem %s0, %s188
        %p190 = pneg %p53
        %p191 = pneg %p50
        %p192 = pneg %p74
        %p193 = pneg %p71
        %p194 = pneg %p95
        %p195 = pneg %p92
        %p196 = pneg %p123
        %p197 = pneg %p120
        %s198 = sand.u32 %s110, 1
        %s199 = scalar_lea.sflag [#allocation4], %s198
        %s200 = sand.u32 %s110, 1
        %s201 = smul.addr %s200, 16
        %s202 = scalar_lea.vmem [#allocation5], %s201
        %p203 = scmp.lt.s32.totalorder %s22, 1
        %s204 = scalar_select %p203, %s22, 1
        %p205 = scmp.lt.s32.totalorder %s23, 0
        %s206 = scalar_select %p205, %s23, 0
        %s207 = smul.addr %s206, 3
        %s208 = smul.addr %s204, 3
        %s209 = sadd.s32 %s207, %s208
        %s210 = smul.addr %s209, 4
        %s211 = scalar_lea.vmem %s0, %s210
        %v213 = vld [vmem:[%s2] sm:$0x1]
        %v215 = vlaneseq
        %v216 = vshrl.u32 %v215, 7
        %v217 = vsub.s32 0, %v216
        %v218 = vrot.slane %v213, %v217
        %v220 = vld [vmem:[%s211] sm:$0xf]
        %v221 = vld [vmem:[%s211 + $0x4] sm:$0xf]
        %v222 = vld [vmem:[#allocation2] sm:$0xf]
        %v223 = vld [vmem:[#allocation2 + $0x4] sm:$0xf]
        %v224 = vld [vmem:[#allocation2 + $0x8] sm:$0xf]
        %v225 = vld [vmem:[#allocation2 + $0xc] sm:$0xf]
        %v226 = vld [vmem:[#allocation2 + $0x10] sm:$0xf]
        %v227 = vld [vmem:[#allocation2 + $0x14] sm:$0xf]
        %v228 = vld [vmem:[#allocation2 + $0x18] sm:$0xf]
        %v229 = vld [vmem:[#allocation2 + $0x1c] sm:$0xf]
        %v230 = vld [vmem:[#allocation2 + $0x20] sm:$0xf]
        %v233 = vunpack.c.l.b16 %v220
        %v234 = vunpack.c.l.b16 %v221
        %v235 = vpack.c.b16 %v234, %v233
        %v245 = vunpack.c.l.b16 %v222
        %v246 = vunpack.c.l.b16 %v223
        %v247 = vunpack.c.l.b16 %v224
        %v248 = vunpack.c.l.b16 %v225
        %v249 = vunpack.c.l.b16 %v226
        %v250 = vunpack.c.l.b16 %v227
        %v251 = vunpack.c.l.b16 %v228
        %v252 = vunpack.c.l.b16 %v229
        %v253 = vunpack.c.l.b16 %v230
        %v254 = vpack.c.b16 %v246, %v245
        %v255 = vpack.c.b16 %v248, %v247
        %v256 = vpack.c.b16 %v250, %v249
        %v257 = vpack.c.b16 %v252, %v251
        %v258 = vpack.c.b16 %v253, %v253
        %vm263 = vcmask 588800
        %v265 = vsel %vm263, %v235, 0
        %vm267 = vcmask 1043456
        %v269 = vsel %vm267, %v258, 0
        %271 = vmatprep.subr.bf16.mxu0 0
        %272 = vmatpush1.bf16.msra.mxu0 %v254
        %273 = vmatprep.subr.bf16.mxu0 0
        %274 = vmatpush1.bf16.msra.mxu0 %v255
        %275 = vmatprep.subr.bf16.mxu0 0
        %276 = vmatpush1.bf16.msra.mxu0 %v256
        %277 = vmatprep.subr.bf16.mxu0 0
        %278 = vmatpush1.bf16.msra.mxu0 %v257
        %279 = vmatprep.subr.bf16.mxu0 0
        %280 = vmatpush1.bf16.msra.mxu0 %v269
        %281 = vmatprep.subr.bf16.mxu0 0
        %282 = vmatpush1.bf16.msra.mxu0 0
        %283 = vmatprep.subr.bf16.mxu0 0
        %284 = vmatpush1.bf16.msra.mxu0 0
        %285 = vmatprep.subr.bf16.mxu0 0
        %286 = vmatpush1.bf16.msra.mxu0 0
        %287 = vmatprep.subr.bf16.mxu0 0
        %288 = vmatpush1.bf16.msra.mxu0 0
        %289 = vmatprep.subr.bf16.mxu0 0
        %290 = vmatpush1.bf16.msra.mxu0 0
        %291 = vmatprep.subr.bf16.mxu0 0
        %292 = vmatpush1.bf16.msra.mxu0 0
        %293 = vmatprep.subr.bf16.mxu0 0
        %294 = vmatpush1.bf16.msra.mxu0 0
        %295 = vmatprep.subr.bf16.mxu0 0
        %296 = vmatpush1.bf16.msra.mxu0 0
        %297 = vmatprep.subr.bf16.mxu0 0
        %298 = vmatpush1.bf16.msra.mxu0 0
        %299 = vmatprep.subr.bf16.mxu0 0
        %300 = vmatpush1.bf16.msra.mxu0 0
        %301 = vmatprep.subr.bf16.mxu0 0
        %302 = vmatpush1.bf16.msra.mxu0 0
        %303 = vmatprep.mubr.bf16.mxu0 0
        %304 = vmatmul.mubr.bf16.gmra.mrb[0].mxu0 %v265
        %v305 = vpop.f32.mrb[0].mxu0
        %v306 = vadd.f32 0.0, %v305
        %v307 = vpop.f32.mrb[0].mxu0
        %v308 = vpop.f32.mrb[0].mxu0
        %v309 = vadd.f32 0.0, %v308
        %v310 = vpop.f32.mrb[0].mxu0
        %311 = vdwg.mxu0
        %v312 = vadd.f32 %v218, %v306
        %v313 = vadd.f32 %v218, %v309
        %v314 = vld [vmem:[%s211] sm:$0xf]
        %v315 = vld [vmem:[%s211 + $0x4] sm:$0xf]
        %v316 = vld [vmem:[%s211 + $0x8] sm:$0x1]
        %s317 = scalar_lea.vmem [#allocation2], 36
        %v318 = vld [vmem:[%s317] sm:$0xf]
        %v319 = vld [vmem:[%s317 + $0x4] sm:$0xf]
        %v320 = vld [vmem:[%s317 + $0x8] sm:$0xf]
        %v321 = vld [vmem:[%s317 + $0xc] sm:$0xf]
        %v322 = vld [vmem:[%s317 + $0x10] sm:$0xf]
        %v323 = vld [vmem:[%s317 + $0x14] sm:$0xf]
        %v324 = vld [vmem:[%s317 + $0x18] sm:$0xf]
        %v325 = vld [vmem:[%s317 + $0x1c] sm:$0xf]
        %v326 = vld [vmem:[%s317 + $0x20] sm:$0xf]
        %v330 = vunpack.c.l.b16 %v314
        %v331 = vunpack.c.l.b16 %v315
        %v332 = vunpack.c.l.b16 %v316
        %v333 = vpack.c.b16 %v331, %v330
        %v334 = vpack.c.b16 %v332, %v332
        %vm335 = vsmask.f32 7424
        %v337 = vshrl.u32 %v333, 16
        %v339 = vshll.u32 %v333, 16
        %v341 = vrot.slane %v339, 1
        %v342 = vor.u32 %v337, %v341
        %v344 = vshll.u32 %v334, 16
        %v346 = vrot.slane %v344, 1
        %v347 = vsel %vm335, %v342, %v346
        %v357 = vunpack.c.l.b16 %v318
        %v358 = vunpack.c.l.b16 %v319
        %v359 = vunpack.c.l.b16 %v320
        %v360 = vunpack.c.l.b16 %v321
        %v361 = vunpack.c.l.b16 %v322
        %v362 = vunpack.c.l.b16 %v323
        %v363 = vunpack.c.l.b16 %v324
        %v364 = vunpack.c.l.b16 %v325
        %v365 = vunpack.c.l.b16 %v326
        %v366 = vpack.c.b16 %v358, %v357
        %v367 = vpack.c.b16 %v360, %v359
        %v368 = vpack.c.b16 %v362, %v361
        %v369 = vpack.c.b16 %v364, %v363
        %v370 = vpack.c.b16 %v365, %v365
        %v376 = vsel %vm263, %v347, 0
        %v379 = vsel %vm267, %v370, 0
        %381 = vmatprep.subr.bf16.mxu0 0
        %382 = vmatpush1.bf16.msra.mxu0 %v366
        %383 = vmatprep.subr.bf16.mxu0 0
        %384 = vmatpush1.bf16.msra.mxu0 %v367
        %385 = vmatprep.subr.bf16.mxu0 0
        %386 = vmatpush1.bf16.msra.mxu0 %v368
        %387 = vmatprep.subr.bf16.mxu0 0
        %388 = vmatpush1.bf16.msra.mxu0 %v369
        %389 = vmatprep.subr.bf16.mxu0 0
        %390 = vmatpush1.bf16.msra.mxu0 %v379
        %391 = vmatprep.subr.bf16.mxu0 0
        %392 = vmatpush1.bf16.msra.mxu0 0
        %393 = vmatprep.subr.bf16.mxu0 0
        %394 = vmatpush1.bf16.msra.mxu0 0
        %395 = vmatprep.subr.bf16.mxu0 0
        %396 = vmatpush1.bf16.msra.mxu0 0
        %397 = vmatprep.subr.bf16.mxu0 0
        %398 = vmatpush1.bf16.msra.mxu0 0
        %399 = vmatprep.subr.bf16.mxu0 0
        %400 = vmatpush1.bf16.msra.mxu0 0
        %401 = vmatprep.subr.bf16.mxu0 0
        %402 = vmatpush1.bf16.msra.mxu0 0
        %403 = vmatprep.subr.bf16.mxu0 0
        %404 = vmatpush1.bf16.msra.mxu0 0
        %405 = vmatprep.subr.bf16.mxu0 0
        %406 = vmatpush1.bf16.msra.mxu0 0
        %407 = vmatprep.subr.bf16.mxu0 0
        %408 = vmatpush1.bf16.msra.mxu0 0
        %409 = vmatprep.subr.bf16.mxu0 0
        %410 = vmatpush1.bf16.msra.mxu0 0
        %411 = vmatprep.subr.bf16.mxu0 0
        %412 = vmatpush1.bf16.msra.mxu0 0
        %413 = vmatprep.mubr.bf16.mxu0 0
        %414 = vmatmul.mubr.bf16.gmra.mrb[0].mxu0 %v376
        %v415 = vpop.f32.mrb[0].mxu0
        %v416 = vadd.f32 0.0, %v415
        %v417 = vpop.f32.mrb[0].mxu0
        %v418 = vpop.f32.mrb[0].mxu0
        %v419 = vadd.f32 0.0, %v418
        %v420 = vpop.f32.mrb[0].mxu0
        %421 = vdwg.mxu0
        %v422 = vadd.f32 %v312, %v416
        %v423 = vadd.f32 %v313, %v419
        %v424 = vld [vmem:[%s211] sm:$0xe]
        %s425 = scalar_lea.vmem [#allocation2], 72
        %v426 = vld [vmem:[%s425] sm:$0xf]
        %v427 = vld [vmem:[%s425 + $0x4] sm:$0xf]
        %v428 = vld [vmem:[%s425 + $0x8] sm:$0xf]
        %v429 = vld [vmem:[%s425 + $0xc] sm:$0xf]
        %v430 = vld [vmem:[%s425 + $0x10] sm:$0xf]
        %v431 = vld [vmem:[%s425 + $0x14] sm:$0xf]
        %v432 = vld [vmem:[%s425 + $0x18] sm:$0xf]
        %v433 = vld [vmem:[%s425 + $0x1c] sm:$0xf]
        %v434 = vld [vmem:[%s425 + $0x20] sm:$0xf]
        %v436 = vunpack.c.l.b16 %v424
        %v437 = vpack.c.b16 %v331, %v436
        %vm438 = vcmask 1046528
        %v439 = vrot.slane %v437, 1
        %v440 = vrot.slane %v334, 1
        %v441 = vsel %vm438, %v439, %v440
        %v451 = vunpack.c.l.b16 %v426
        %v452 = vunpack.c.l.b16 %v427
        %v453 = vunpack.c.l.b16 %v428
        %v454 = vunpack.c.l.b16 %v429
        %v455 = vunpack.c.l.b16 %v430
        %v456 = vunpack.c.l.b16 %v431
        %v457 = vunpack.c.l.b16 %v432
        %v458 = vunpack.c.l.b16 %v433
        %v459 = vunpack.c.l.b16 %v434
        %v460 = vpack.c.b16 %v452, %v451
        %v461 = vpack.c.b16 %v454, %v453
        %v462 = vpack.c.b16 %v456, %v455
        %v463 = vpack.c.b16 %v458, %v457
        %v464 = vpack.c.b16 %v459, %v459
        %v470 = vsel %vm263, %v441, 0
        %v473 = vsel %vm267, %v464, 0
        %475 = vmatprep.subr.bf16.mxu0 0
        %476 = vmatpush1.bf16.msra.mxu0 %v460
        %477 = vmatprep.subr.bf16.mxu0 0
        %478 = vmatpush1.bf16.msra.mxu0 %v461
        %479 = vmatprep.subr.bf16.mxu0 0
        %480 = vmatpush1.bf16.msra.mxu0 %v462
        %481 = vmatprep.subr.bf16.mxu0 0
        %482 = vmatpush1.bf16.msra.mxu0 %v463
        %483 = vmatprep.subr.bf16.mxu0 0
        %484 = vmatpush1.bf16.msra.mxu0 %v473
        %485 = vmatprep.subr.bf16.mxu0 0
        %486 = vmatpush1.bf16.msra.mxu0 0
        %487 = vmatprep.subr.bf16.mxu0 0
        %488 = vmatpush1.bf16.msra.mxu0 0
        %489 = vmatprep.subr.bf16.mxu0 0
        %490 = vmatpush1.bf16.msra.mxu0 0
        %491 = vmatprep.subr.bf16.mxu0 0
        %492 = vmatpush1.bf16.msra.mxu0 0
        %493 = vmatprep.subr.bf16.mxu0 0
        %494 = vmatpush1.bf16.msra.mxu0 0
        %495 = vmatprep.subr.bf16.mxu0 0
        %496 = vmatpush1.bf16.msra.mxu0 0
        %497 = vmatprep.subr.bf16.mxu0 0
        %498 = vmatpush1.bf16.msra.mxu0 0
        %499 = vmatprep.subr.bf16.mxu0 0
        %500 = vmatpush1.bf16.msra.mxu0 0
        %501 = vmatprep.subr.bf16.mxu0 0
        %502 = vmatpush1.bf16.msra.mxu0 0
        %503 = vmatprep.subr.bf16.mxu0 0
        %504 = vmatpush1.bf16.msra.mxu0 0
        %505 = vmatprep.subr.bf16.mxu0 0
        %506 = vmatpush1.bf16.msra.mxu0 0
        %507 = vmatprep.mubr.bf16.mxu0 0
        %508 = vmatmul.mubr.bf16.gmra.mrb[0].mxu0 %v470
        %v509 = vpop.f32.mrb[0].mxu0
        %v510 = vadd.f32 0.0, %v509
        %v511 = vpop.f32.mrb[0].mxu0
        %v512 = vpop.f32.mrb[0].mxu0
        %v513 = vadd.f32 0.0, %v512
        %v514 = vpop.f32.mrb[0].mxu0
        %515 = vdwg.mxu0
        %v516 = vadd.f32 %v422, %v510
        %v517 = vadd.f32 %v423, %v513
        %v518 = vmax.f32 %v516, 0.0
        %v519 = vmax.f32 %v517, 0.0
        %520 = vst [vmem:[%s202] sm:$0xff] %v518
        %521 = vst [vmem:[%s202 + $0x8] sm:$0xff] %v519
        %s522 = sand.u32 %s110, 1
        %s523 = scalar_lea.sflag [#allocation4], %s522
        %s524 = sand.u32 %s110, 1
        %s525 = smul.addr %s524, 16
        %s526 = scalar_lea.vmem [#allocation5], %s525
        // Predicated region
        $region37: #{tpu_custom_call.1} parent=31 // pred_check
          %p527 = pneg %p120
        $region38: #{tpu_custom_call.1} parent=31 // pred_check_branch
          %529 = sbr.rel (%p527) target = $region40
        $region39: #{tpu_custom_call.1} parent=31 // pred_region
          %s531 = ssub.s32 256, 256
          %532 = vsyncadd %s523, %s531
          %s533 = smul.addr %s23, 2
          %s534 = smul.addr %s22, 2
          %s535 = sadd.s32 %s533, %s534
          %s536 = smul.addr %s535, 128
          %s537 = scalar_lea.hbm %s3, %s536
          %s538 = sshll.u32 %s526, 4
          %s539 = int_to_ptr.vmem [resolvable:$true] %s538
          %544 = dma.vmem_to_hbm [thread:$0]  %s539, 256, %s537, %s523, 128, 128, 8
        $region40: #{tpu_custom_call.1} parent=31 // pred_fallthru
          _
      $region32: #{tpu_custom_call.1} parent=5 // pred_fallthru
        _
      %p545 = scmp.le.s32.totalorder 2, %s13
      // Predicated region
      $region41: #{tpu_custom_call.1} parent=5 // pred_check
        %p546 = pneg %p545
      $region42: #{tpu_custom_call.1} parent=5 // pred_check_branch
        %548 = sbr.rel (%p546) target = $region44
      $region43: #{tpu_custom_call.1} parent=5 // pred_region
        %s549 = ssub.s32 %s13, 2
        // Predicated region
        $region45: #{tpu_custom_call.1} parent=43 // pred_check
          %p550 = pneg %p126
        $region46: #{tpu_custom_call.1} parent=43 // pred_check_branch
          %552 = sbr.rel (%p550) target = $region48
        $region47: #{tpu_custom_call.1} parent=43 // pred_region
          %s553 = sand.u32 %s111, 1
          %s554 = scalar_lea.sflag [#allocation4], %s553
          %s555 = sand.u32 %s111, 1
          %s556 = smul.addr %s555, 16
          %s557 = scalar_lea.vmem [#allocation5], %s556
          %558 = dma.done %s554, 256
        $region48: #{tpu_custom_call.1} parent=43 // pred_fallthru
          _
      $region44: #{tpu_custom_call.1} parent=5 // pred_fallthru
        _
    $region6: #{tpu_custom_call.1} parent=1 // loop_footer
      %s17 = sadd.s32 1, %s13
    $region7: #{tpu_custom_call.1} parent=1 // loop_footer_branch
      %12 = sbr.rel target = $region3
    $region8: #{tpu_custom_call.1} parent=1 // loop_exit
      _
    %559 = vsyncpa [#allocation3], 1
    %s560 = scalar_lea.sflag [#allocation3], 1
    %561 = vsyncpa %s560, 1
    %562 = vsyncpa [#allocation4], 1
    %s563 = scalar_lea.sflag [#allocation4], 1
    %564 = vsyncpa %s563, 1

</llo_original>
